<compile_context>
chip_gen: v7x
topology: tpu7x:2x2x1
jax: 0.10.0
libtpu: 0.0.40
codegen_flags: <defaults>
</compile_context>

<pallas_src>
import jax
import jax.numpy as jnp
import numpy as np
from jax.experimental import pallas as pl
from jax.experimental.pallas import tpu as pltpu


def _round_up(x, m):
    return ((x + m - 1) // m) * m


def _make_kernel(f_true, k_out, e_true):
    """Kernel closure over the static feature dim, user count and true NumE."""

    def kernel(scal_ref, hxT_ref, w1T_ref, b1T_ref, w2T_ref, b2T_ref,
               ptT_ref, part_ref):
        step = pl.program_id(0)

        snr_thr = scal_ref[0]          # 2**rate - 1
        delay_const = scal_ref[1]      # numofbyte / (bandwidth * rate)

        hxT = hxT_ref[...]                           # (8, TE); rows >= f_true are 0
        te = hxT.shape[1]
        pt_max = hxT[f_true - 1:f_true, :]           # (1, TE) == Hx[:, -1]
        factors = hxT[f_true - 2:f_true - 1, :]      # (1, TE) == Hx[:, -2]

        # ---- inner model (2-layer MLP surrogate for self.model), lane-dense ----
        h = jnp.dot(w1T_ref[...], hxT, preferred_element_type=jnp.float32) + b1T_ref[...]
        h = jnp.maximum(h, 0.0)                      # (H, TE)
        logits = jnp.dot(w2T_ref[...], h, preferred_element_type=jnp.float32) + b2T_ref[...]
        # sigmoid via approx reciprocal (stays on the EUP slot)
        pt8 = pl.reciprocal(1.0 + jnp.exp(-logits), approx=True) * pt_max   # (8, TE)
        ptT_ref[...] = pt8.astype(ptT_ref.dtype)     # full unmasked 8-sublane store

        pt = pt8[0:k_out, :]                         # (K, TE) real users only

        # ---- Rayleigh outage / delay (single exp reused everywhere) ----
        x = snr_thr / (factors * pt + 1e-12)         # (K, TE)
        exp_neg_x = jnp.exp(-x)                      # == (1 - pout), reused
        series = x * (1.0 - 0.5 * x * (1.0 - x * (1.0 / 3.0)))   # stable 1-exp(-x), x small
        pout = jnp.maximum(jnp.where(x < 1e-3, series, 1.0 - exp_neg_x), 1e-12)
        # delay = delay_const / (1 - pout) == delay_const * exp(x), clamped at ~1e12
        delay = delay_const * jnp.exp(jnp.minimum(x, 27.631))

        # ---- mask lanes that are batch padding (tail tile) ----
        lane = jax.lax.broadcasted_iota(jnp.int32, (1, te), 1)
        valid = ((step * te + lane) < e_true).astype(jnp.float32)   # (1, TE)

        # sublane (VPU) partial reductions first, mask once per stat
        delay_lane = jnp.sum(delay, axis=0, keepdims=True) * valid               # -> l_p
        ptot_lane = jnp.sum(pt * exp_neg_x, axis=0, keepdims=True)               # sum_k pt*(1-pout)
        pow_lane = (ptot_lane - pt_max) * valid                                  # -> ef['power']
        log_lane = jnp.log10(pout[k_out - 1:k_out, :]) * valid                   # -> ef['pout']

        delay_sum = jnp.sum(delay_lane)
        pow_sum = jnp.sum(pow_lane)
        log_sum = jnp.sum(log_lane)

        # per-tile partial stats -> own (8,128) output block; no resident
        # accumulator, so the grid axis can be "parallel" (megacore on v7x)
        lane8 = jax.lax.broadcasted_iota(jnp.int32, (8, 128), 1)
        sub8 = jax.lax.broadcasted_iota(jnp.int32, (8, 128), 0)
        row0 = sub8 == 0
        blk = jnp.where(row0 & (lane8 == 0), delay_sum,
              jnp.where(row0 & (lane8 == 1), pow_sum,
              jnp.where(row0 & (lane8 == 2), log_sum, 0.0)))
        part_ref[...] = blk

    return kernel


def primal_dual_forward(Hx, W1, b1, W2, b2, *, rate, numofbyte, bandwidth,
                        bounds, lam_power=1.0, lam_pout=1.0, block_e=4096):
    """PrimalDualModel.forward.

    Args:
      Hx: (NumE, F) channel features; Hx[:, -1]=pt_max, Hx[:, -2]=fading factor.
      W1 (F, H), b1 (H,), W2 (H, K), b2 (K,): inner-model MLP parameters.
    Returns:
      pt    : (NumE, NumK) transmit powers (the module's return value).
      stats : (8,) f32 = [l_p, ef_power, ef_pout, l_d, lagr, 0, 0, 0]
              (entries 5..7 are reserved/unused).
    """
    Hx = jnp.asarray(Hx, jnp.float32)
    E, f_true = Hx.shape
    W1 = jnp.asarray(W1, jnp.float32)            # (F, H)
    W2 = jnp.asarray(W2, jnp.float32)            # (H, K)
    hdim = W1.shape[1]
    K = W2.shape[1]
    FP, KP = 8, 8                                # sublane-padded dims

    # Big tiles: single tile for small E, otherwise block_e-wide (>=128) tiles.
    te = max(128, min(_round_up(block_e, 128), _round_up(E, 128)))
    e_pad = _round_up(E, te)
    grid = (e_pad // te,)

    # Transposed, lane-dense, 8-sublane-padded layouts.
    hxT = jnp.zeros((FP, e_pad), jnp.float32).at[:f_true, :E].set(Hx.T)
    w1T = jnp.zeros((hdim, FP), jnp.float32).at[:, :f_true].set(W1.T)
    b1T = jnp.asarray(b1, jnp.float32).reshape(hdim, 1)
    w2T = jnp.zeros((KP, hdim), jnp.float32).at[:K, :].set(W2.T)
    b2T = jnp.zeros((KP, 1), jnp.float32).at[:K, 0].set(jnp.asarray(b2, jnp.float32))

    snr_thr = 2.0 ** rate - 1.0
    delay_const = numofbyte / (bandwidth * rate)
    scalars = jnp.array([snr_thr, delay_const], jnp.float32)

    kernel = _make_kernel(f_true, K, E)

    flops = 2 * e_pad * (FP * hdim + hdim * KP) + 32 * e_pad * K
    transcendentals = 5 * e_pad * K
    bytes_accessed = int(4 * (hxT.size + KP * e_pad + w1T.size + w2T.size
                              + hdim + KP + grid[0] * 8 * 128 + 2))

    ptT, partials = pl.pallas_call(
        kernel,
        grid=grid,
        in_specs=[
            pl.BlockSpec(memory_space=pltpu.MemorySpace.SMEM),   # scalars
            pl.BlockSpec((FP, te), lambda i: (0, i)),            # HxT tile
            pl.BlockSpec((hdim, FP), lambda i: (0, 0)),          # W1T (resident)
            pl.BlockSpec((hdim, 1), lambda i: (0, 0)),           # b1T
            pl.BlockSpec((KP, hdim), lambda i: (0, 0)),          # W2T
            pl.BlockSpec((KP, 1), lambda i: (0, 0)),             # b2T
        ],
        out_specs=(
            pl.BlockSpec((KP, te), lambda i: (0, i)),            # ptT tile
            pl.BlockSpec((8, 128), lambda i: (i, 0)),            # per-tile partial stats
        ),
        out_shape=(jax.ShapeDtypeStruct((KP, e_pad), jnp.float32),
                   jax.ShapeDtypeStruct((grid[0] * 8, 128), jnp.float32)),
        compiler_params=pltpu.CompilerParams(
            dimension_semantics=("parallel",)),
        cost_estimate=pl.CostEstimate(flops=flops,
                                      transcendentals=transcendentals,
                                      bytes_accessed=bytes_accessed),
    )(scalars, hxT, w1T, b1T, w2T, b2T)

    # Cheap finalize in plain JAX (3 scalars per tile): means, dual, Lagrangian.
    totals = jnp.sum(partials, axis=0)                      # (128,), lanes 0..2 used
    l_p = totals[0] / (E * K)                                # self.l_p
    ef_power = totals[1] / E                                 # self.ef['power']
    ef_pout = totals[2] / E - bounds                         # self.ef['pout']
    l_d = lam_power * ef_power + lam_pout * ef_pout          # self.l_d
    lagr = l_p + l_d                                         # self.lagr
    stats = jnp.concatenate([jnp.stack([l_p, ef_power, ef_pout, l_d, lagr]),
                             jnp.zeros((3,), jnp.float32)])

    pt = ptT[:K, :E].T        # back to the module's (NumE, NumK) layout (plumbing)
    return pt, stats


if __name__ == "__main__":
    key = jax.random.PRNGKey(0)
    E, fdim, hdim, K = 300, 6, 32, 4      # NumE=300 channel draws, NumK=4 users

    k1, k2, k3, k4 = jax.random.split(key, 4)
    feats = jax.random.uniform(k1, (E, fdim - 2), minval=0.1, maxval=1.0)
    factors = jax.random.uniform(k2, (E, 1), minval=0.5, maxval=2.0)   # Hx[:, -2]
    pt_max = jnp.full((E, 1), 4.0, jnp.float32)                        # Hx[:, -1]
    Hx = jnp.concatenate([feats, factors, pt_max], axis=1).astype(jnp.float32)

    # Deterministic MLP parameters (the inner `model`)
    W1 = (jax.random.normal(k3, (fdim, hdim)) * 0.1).astype(jnp.float32)
    b1 = jnp.zeros((hdim,), jnp.float32)
    W2 = (jax.random.normal(k4, (hdim, K)) * 0.1).astype(jnp.float32)
    b2 = jnp.zeros((K,), jnp.float32)

    # forward() args + dual multipliers (both init to 1.0, per __init__)
    rate, numofbyte, bandwidth, bounds = 2.0, 1024.0, 1.0e3, -3.0
    lam_power, lam_pout = 1.0, 1.0

    # Default big tile: E=300 -> single 384-lane tile, grid=(1,).
    pt, stats = primal_dual_forward(
        Hx, W1, b1, W2, b2, rate=rate, numofbyte=numofbyte,
        bandwidth=bandwidth, bounds=bounds, lam_power=lam_power,
        lam_pout=lam_pout)
    jax.block_until_ready((pt, stats))

    # ---- pure-JAX reference (same assumed formulas) for a sanity check ----
    pt_max_r = Hx[:, -1:]
    factors_r = Hx[:, -2:-1]
    h_r = jnp.maximum(Hx @ W1 + b1, 0.0)
    pt_r = jax.nn.sigmoid(h_r @ W2 + b2) * pt_max_r
    snr = 2.0 ** rate - 1.0
    pout_r = jnp.clip(-jnp.expm1(-snr / (factors_r * pt_r + 1e-12)), 1e-12, 1.0)
    delay_r = numofbyte / (bandwidth * rate * (1.0 - pout_r))
    l_p_r = jnp.mean(delay_r)
    ef_pout_r = jnp.mean(jnp.log10(pout_r[:, -1])) - bounds
    ef_power_r = jnp.mean(jnp.sum(pt_r * (1.0 - pout_r), axis=1, keepdims=True)
                          - pt_max_r)
    l_d_r = lam_power * ef_power_r + lam_pout * ef_pout_r
    ref_stats = jnp.array([l_p_r, ef_power_r, ef_pout_r, l_d_r, l_p_r + l_d_r])

    # pt uses an approx-EUP reciprocal sigmoid (~1e-3-class relative error).
    np.testing.assert_allclose(np.asarray(pt), np.asarray(pt_r),
                               rtol=1e-2, atol=1e-5)
    np.testing.assert_allclose(np.asarray(stats[:5]), np.asarray(ref_stats),
                               rtol=2e-2, atol=2e-3)
    print("KERNEL_OK")
</pallas_src>

<mosaic_0001>
module attributes {stable_mosaic.version = 11 : i64} {
  func.func @kernel(%arg0: i32, %arg1: memref<2xf32, #tpu.memory_space<smem>>, %arg2: memref<8x384xf32, #tpu.memory_space<vmem>>, %arg3: memref<32x8xf32, #tpu.memory_space<vmem>>, %arg4: memref<32x1xf32, #tpu.memory_space<vmem>>, %arg5: memref<8x32xf32, #tpu.memory_space<vmem>>, %arg6: memref<8x1xf32, #tpu.memory_space<vmem>>, %arg7: memref<8x384xf32, #tpu.memory_space<vmem>>, %arg8: memref<8x128xf32, #tpu.memory_space<vmem>>) attributes {dimension_semantics = [#tpu.dimension_semantics<parallel>], iteration_bounds = array<i64: 1>, scalar_prefetch = 0 : i64, scratch_operands = 0 : i64, tpu.core_type = #tpu.core_type<tc>, window_params = [{transform_indices = @transform_0, window_bounds = array<i64: 2>}, {transform_indices = @transform_1, window_bounds = array<i64: 8, 384>}, {pipeline_mode = #tpu.pipeline_mode<synchronous>, transform_indices = @transform_2, window_bounds = array<i64: 32, 8>}, {pipeline_mode = #tpu.pipeline_mode<synchronous>, transform_indices = @transform_3, window_bounds = array<i64: 32, 1>}, {pipeline_mode = #tpu.pipeline_mode<synchronous>, transform_indices = @transform_4, window_bounds = array<i64: 8, 32>}, {pipeline_mode = #tpu.pipeline_mode<synchronous>, transform_indices = @transform_5, window_bounds = array<i64: 8, 1>}, {transform_indices = @transform_6, window_bounds = array<i64: 8, 384>}, {transform_indices = @transform_7, window_bounds = array<i64: 8, 128>}]} {
    %c0 = arith.constant 0 : index
    %0 = memref.load %arg1[%c0] : memref<2xf32, #tpu.memory_space<smem>>
    %c1 = arith.constant 1 : index
    %1 = memref.load %arg1[%c1] : memref<2xf32, #tpu.memory_space<smem>>
    %c0_0 = arith.constant 0 : index
    %c0_1 = arith.constant 0 : index
    %2 = vector.load %arg2[%c0_0, %c0_1] : memref<8x384xf32, #tpu.memory_space<vmem>>, vector<8x384xf32>
    %3 = vector.extract_strided_slice %2 {offsets = [5, 0], sizes = [1, 384], strides = [1, 1]} : vector<8x384xf32> to vector<1x384xf32>
    %4 = vector.extract_strided_slice %2 {offsets = [4, 0], sizes = [1, 384], strides = [1, 1]} : vector<8x384xf32> to vector<1x384xf32>
    %c0_2 = arith.constant 0 : index
    %c0_3 = arith.constant 0 : index
    %5 = vector.load %arg3[%c0_2, %c0_3] : memref<32x8xf32, #tpu.memory_space<vmem>>, vector<32x8xf32>
    %cst = arith.constant dense<0.000000e+00> : vector<32x384xf32>
    %6 = tpu.matmul %5, %2, %cst {dimension_numbers = #tpu.dot_dimension_numbers<[1], [0], [0], [1], [0, 0, 1, 1], [], []>} : vector<32x8xf32>, vector<8x384xf32>, vector<32x384xf32> -> vector<32x384xf32>
    %c0_4 = arith.constant 0 : index
    %c0_5 = arith.constant 0 : index
    %7 = vector.load %arg4[%c0_4, %c0_5] : memref<32x1xf32, #tpu.memory_space<vmem>>, vector<32x1xf32>
    %8 = vector.broadcast %7 : vector<32x1xf32> to vector<32x384xf32>
    %9 = arith.addf %6, %8 : vector<32x384xf32>
    %cst_6 = arith.constant 0.000000e+00 : f32
    %10 = vector.broadcast %cst_6 : f32 to vector<32x384xf32>
    %11 = arith.maximumf %9, %10 : vector<32x384xf32>
    %c0_7 = arith.constant 0 : index
    %c0_8 = arith.constant 0 : index
    %12 = vector.load %arg5[%c0_7, %c0_8] : memref<8x32xf32, #tpu.memory_space<vmem>>, vector<8x32xf32>
    %cst_9 = arith.constant dense<0.000000e+00> : vector<8x384xf32>
    %13 = tpu.matmul %12, %11, %cst_9 {dimension_numbers = #tpu.dot_dimension_numbers<[1], [0], [0], [1], [0, 0, 1, 1], [], []>} : vector<8x32xf32>, vector<32x384xf32>, vector<8x384xf32> -> vector<8x384xf32>
    %c0_10 = arith.constant 0 : index
    %c0_11 = arith.constant 0 : index
    %14 = vector.load %arg6[%c0_10, %c0_11] : memref<8x1xf32, #tpu.memory_space<vmem>>, vector<8x1xf32>
    %15 = vector.broadcast %14 : vector<8x1xf32> to vector<8x384xf32>
    %16 = arith.addf %13, %15 : vector<8x384xf32>
    %cst_12 = arith.constant 0.000000e+00 : f32
    %17 = vector.broadcast %cst_12 : f32 to vector<8x384xf32>
    %18 = arith.subf %17, %16 : vector<8x384xf32>
    %19 = math.exp %18 : vector<8x384xf32>
    %cst_13 = arith.constant 1.000000e+00 : f32
    %20 = vector.broadcast %cst_13 : f32 to vector<8x384xf32>
    %21 = arith.addf %20, %19 : vector<8x384xf32>
    %22 = tpu.reciprocal %21 {approx = true} : vector<8x384xf32> -> vector<8x384xf32>
    %23 = vector.broadcast %3 : vector<1x384xf32> to vector<8x384xf32>
    %24 = arith.mulf %22, %23 : vector<8x384xf32>
    %c0_14 = arith.constant 0 : index
    %c0_15 = arith.constant 0 : index
    %25 = vector.load %arg7[%c0_14, %c0_15] : memref<8x384xf32, #tpu.memory_space<vmem>>, vector<8x384xf32>
    tpu.vector_store %arg7[%c0_14, %c0_15], %24 {strides = array<i32>} : memref<8x384xf32, #tpu.memory_space<vmem>>, vector<8x384xf32>,
    %26 = vector.extract_strided_slice %24 {offsets = [0, 0], sizes = [4, 384], strides = [1, 1]} : vector<8x384xf32> to vector<4x384xf32>
    %27 = vector.broadcast %4 : vector<1x384xf32> to vector<4x384xf32>
    %28 = arith.mulf %27, %26 : vector<4x384xf32>
    %cst_16 = arith.constant 9.99999996E-13 : f32
    %29 = vector.broadcast %cst_16 : f32 to vector<4x384xf32>
    %30 = arith.addf %28, %29 : vector<4x384xf32>
    %31 = vector.broadcast %0 : f32 to vector<4x384xf32>
    %32 = arith.divf %31, %30 : vector<4x384xf32>
    %cst_17 = arith.constant 0.000000e+00 : f32
    %33 = vector.broadcast %cst_17 : f32 to vector<4x384xf32>
    %34 = arith.subf %33, %32 : vector<4x384xf32>
    %35 = math.exp %34 : vector<4x384xf32>
    %cst_18 = arith.constant 5.000000e-01 : f32
    %36 = vector.broadcast %cst_18 : f32 to vector<4x384xf32>
    %37 = arith.mulf %36, %32 : vector<4x384xf32>
    %cst_19 = arith.constant 0.333333343 : f32
    %38 = vector.broadcast %cst_19 : f32 to vector<4x384xf32>
    %39 = arith.mulf %32, %38 : vector<4x384xf32>
    %cst_20 = arith.constant 1.000000e+00 : f32
    %40 = vector.broadcast %cst_20 : f32 to vector<4x384xf32>
    %41 = arith.subf %40, %39 : vector<4x384xf32>
    %42 = arith.mulf %37, %41 : vector<4x384xf32>
    %cst_21 = arith.constant 1.000000e+00 : f32
    %43 = vector.broadcast %cst_21 : f32 to vector<4x384xf32>
    %44 = arith.subf %43, %42 : vector<4x384xf32>
    %45 = arith.mulf %32, %44 : vector<4x384xf32>
    %cst_22 = arith.constant 1.000000e-03 : f32
    %46 = vector.broadcast %cst_22 : f32 to vector<4x384xf32>
    %47 = arith.cmpf olt, %32, %46 : vector<4x384xf32>
    %cst_23 = arith.constant 1.000000e+00 : f32
    %48 = vector.broadcast %cst_23 : f32 to vector<4x384xf32>
    %49 = arith.subf %48, %35 : vector<4x384xf32>
    %50 = arith.select %47, %45, %49 : vector<4x384xi1>, vector<4x384xf32>
    %cst_24 = arith.constant 9.99999996E-13 : f32
    %51 = vector.broadcast %cst_24 : f32 to vector<4x384xf32>
    %52 = arith.maximumf %50, %51 : vector<4x384xf32>
    %cst_25 = arith.constant 2.763100e+01 : f32
    %53 = vector.broadcast %cst_25 : f32 to vector<4x384xf32>
    %54 = arith.minimumf %32, %53 : vector<4x384xf32>
    %55 = math.exp %54 : vector<4x384xf32>
    %56 = vector.broadcast %1 : f32 to vector<4x384xf32>
    %57 = arith.mulf %56, %55 : vector<4x384xf32>
    %58 = tpu.iota {dimensions = array<i32: 1>} : vector<1x384xi32>
    %c384_i32 = arith.constant 384 : i32
    %59 = arith.muli %arg0, %c384_i32 : i32
    %60 = vector.broadcast %59 : i32 to vector<1x384xi32>
    %61 = arith.addi %60, %58 : vector<1x384xi32>
    %c300_i32 = arith.constant 300 : i32
    %62 = vector.broadcast %c300_i32 : i32 to vector<1x384xi32>
    %63 = arith.cmpi slt, %61, %62 : vector<1x384xi32>
    %64 = arith.extui %63 : vector<1x384xi1> to vector<1x384xi32>
    %65 = arith.sitofp %64 : vector<1x384xi32> to vector<1x384xf32>
    %cst_26 = arith.constant dense<0.000000e+00> : vector<384xf32>
    %66 = vector.multi_reduction <add>, %57, %cst_26 [0] : vector<4x384xf32> to vector<384xf32>
    %67 = vector.shape_cast %66 : vector<384xf32> to vector<1x384xf32>
    %68 = arith.mulf %67, %65 : vector<1x384xf32>
    %69 = arith.mulf %26, %35 : vector<4x384xf32>
    %cst_27 = arith.constant dense<0.000000e+00> : vector<384xf32>
    %70 = vector.multi_reduction <add>, %69, %cst_27 [0] : vector<4x384xf32> to vector<384xf32>
    %71 = vector.shape_cast %70 : vector<384xf32> to vector<1x384xf32>
    %72 = arith.subf %71, %3 : vector<1x384xf32>
    %73 = arith.mulf %72, %65 : vector<1x384xf32>
    %74 = vector.extract_strided_slice %52 {offsets = [3, 0], sizes = [1, 384], strides = [1, 1]} : vector<4x384xf32> to vector<1x384xf32>
    %75 = math.log %74 : vector<1x384xf32>
    %cst_28 = arith.constant 0.434294492 : f32
    %76 = vector.broadcast %cst_28 : f32 to vector<1x384xf32>
    %77 = arith.mulf %75, %76 : vector<1x384xf32>
    %78 = arith.mulf %77, %65 : vector<1x384xf32>
    %79 = vector.shape_cast %68 : vector<1x384xf32> to vector<1x1x384xf32>
    %cst_29 = arith.constant dense<0.000000e+00> : vector<1xf32>
    %80 = vector.multi_reduction <add>, %79, %cst_29 [1, 2] : vector<1x1x384xf32> to vector<1xf32>
    %81 = vector.shape_cast %80 : vector<1xf32> to vector<1x1x1xf32>
    %82 = vector.extract %81[0, 0, 0] : f32 from vector<1x1x1xf32>
    %83 = vector.shape_cast %73 : vector<1x384xf32> to vector<1x1x384xf32>
    %cst_30 = arith.constant dense<0.000000e+00> : vector<1xf32>
    %84 = vector.multi_reduction <add>, %83, %cst_30 [1, 2] : vector<1x1x384xf32> to vector<1xf32>
    %85 = vector.shape_cast %84 : vector<1xf32> to vector<1x1x1xf32>
    %86 = vector.extract %85[0, 0, 0] : f32 from vector<1x1x1xf32>
    %87 = vector.shape_cast %78 : vector<1x384xf32> to vector<1x1x384xf32>
    %cst_31 = arith.constant dense<0.000000e+00> : vector<1xf32>
    %88 = vector.multi_reduction <add>, %87, %cst_31 [1, 2] : vector<1x1x384xf32> to vector<1xf32>
    %89 = vector.shape_cast %88 : vector<1xf32> to vector<1x1x1xf32>
    %90 = vector.extract %89[0, 0, 0] : f32 from vector<1x1x1xf32>
    %91 = tpu.iota {dimensions = array<i32: 1>} : vector<8x128xi32>
    %92 = tpu.iota {dimensions = array<i32: 0>} : vector<8x128xi32>
    %c0_i32 = arith.constant 0 : i32
    %93 = vector.broadcast %c0_i32 : i32 to vector<8x128xi32>
    %94 = arith.cmpi eq, %92, %93 : vector<8x128xi32>
    %c0_i32_32 = arith.constant 0 : i32
    %95 = vector.broadcast %c0_i32_32 : i32 to vector<8x128xi32>
    %96 = arith.cmpi eq, %91, %95 : vector<8x128xi32>
    %97 = arith.andi %94, %96 : vector<8x128xi1>
    %c1_i32 = arith.constant 1 : i32
    %98 = vector.broadcast %c1_i32 : i32 to vector<8x128xi32>
    %99 = arith.cmpi eq, %91, %98 : vector<8x128xi32>
    %100 = arith.andi %94, %99 : vector<8x128xi1>
    %c2_i32 = arith.constant 2 : i32
    %101 = vector.broadcast %c2_i32 : i32 to vector<8x128xi32>
    %102 = arith.cmpi eq, %91, %101 : vector<8x128xi32>
    %103 = arith.andi %94, %102 : vector<8x128xi1>
    %cst_33 = arith.constant 0.000000e+00 : f32
    %104 = vector.broadcast %90 : f32 to vector<8x128xf32>
    %105 = vector.broadcast %cst_33 : f32 to vector<8x128xf32>
    %106 = arith.select %103, %104, %105 : vector<8x128xi1>, vector<8x128xf32>
    %107 = vector.broadcast %86 : f32 to vector<8x128xf32>
    %108 = arith.select %100, %107, %106 : vector<8x128xi1>, vector<8x128xf32>
    %109 = vector.broadcast %82 : f32 to vector<8x128xf32>
    %110 = arith.select %97, %109, %108 : vector<8x128xi1>, vector<8x128xf32>
    %c0_34 = arith.constant 0 : index
    %c0_35 = arith.constant 0 : index
    %111 = vector.load %arg8[%c0_34, %c0_35] : memref<8x128xf32, #tpu.memory_space<vmem>>, vector<8x128xf32>
    tpu.vector_store %arg8[%c0_34, %c0_35], %110 {strides = array<i32>} : memref<8x128xf32, #tpu.memory_space<vmem>>, vector<8x128xf32>,
    return
  }
  func.func @transform_0(%arg0: i32) -> i32 {
    %c0_i32 = arith.constant 0 : i32
    %c0_i32_0 = arith.constant 0 : i32
    return %c0_i32 : i32
  }
  func.func @transform_1(%arg0: i32) -> (i32, i32) {
    %c0_i32 = arith.constant 0 : i32
    %c0_i32_0 = arith.constant 0 : i32
    return %c0_i32, %arg0 : i32, i32
  }
  func.func @transform_2(%arg0: i32) -> (i32, i32) {
    %c0_i32 = arith.constant 0 : i32
    %c0_i32_0 = arith.constant 0 : i32
    %c0_i32_1 = arith.constant 0 : i32
    return %c0_i32, %c0_i32_0 : i32, i32
  }
  func.func @transform_3(%arg0: i32) -> (i32, i32) {
    %c0_i32 = arith.constant 0 : i32
    %c0_i32_0 = arith.constant 0 : i32
    %c0_i32_1 = arith.constant 0 : i32
    return %c0_i32, %c0_i32_0 : i32, i32
  }
  func.func @transform_4(%arg0: i32) -> (i32, i32) {
    %c0_i32 = arith.constant 0 : i32
    %c0_i32_0 = arith.constant 0 : i32
    %c0_i32_1 = arith.constant 0 : i32
    return %c0_i32, %c0_i32_0 : i32, i32
  }
  func.func @transform_5(%arg0: i32) -> (i32, i32) {
    %c0_i32 = arith.constant 0 : i32
    %c0_i32_0 = arith.constant 0 : i32
    %c0_i32_1 = arith.constant 0 : i32
    return %c0_i32, %c0_i32_0 : i32, i32
  }
  func.func @transform_6(%arg0: i32) -> (i32, i32) {
    %c0_i32 = arith.constant 0 : i32
    %c0_i32_0 = arith.constant 0 : i32
    return %c0_i32, %arg0 : i32, i32
  }
  func.func @transform_7(%arg0: i32) -> (i32, i32) {
    %c0_i32 = arith.constant 0 : i32
    %c0_i32_0 = arith.constant 0 : i32
    return %arg0, %c0_i32 : i32, i32
  }
}

</mosaic_0001>

<llo_original>
// kernel: tpu_custom_call.1
$region0: #{tpu_custom_call.1}
  #allocation0 [shape = 'u32[]', space=smem, size = 0x4, offset = 0x4, fixed_abs, tag = 'smem constant byte address 0x4 - core index']
  #allocation1 [shape = 'u32[144,128]{1,0:T(1,128)}', space=vmem, size = 0x12000, scoped, tag = 'internal scratch']
  %s0 = inlined_call_operand.vmem [shape: f32[2], index: 0, kind: input, shape index: {}]
  %s1 = inlined_call_operand.vmem [shape: f32[8,384], index: 1, kind: input, shape index: {}]
  %s2 = inlined_call_operand.vmem [shape: f32[32,8], index: 2, kind: input, shape index: {}]
  %s3 = inlined_call_operand.vmem [shape: f32[32,1], index: 3, kind: input, shape index: {}]
  %s4 = inlined_call_operand.vmem [shape: f32[8,32], index: 4, kind: input, shape index: {}]
  %s5 = inlined_call_operand.vmem [shape: f32[8,1], index: 5, kind: input, shape index: {}]
  %s6 = inlined_call_operand.hbm [shape: f32[8,384], index: 6, kind: output, shape index: {0}]
  %s7 = inlined_call_operand.hbm [shape: f32[8,128], index: 7, kind: output, shape index: {1}]
  %8 = xla_tuple %s6, %s7
  %s9 = sld [smem:[#allocation0]]
  $region46: #{tpu_custom_call.1} parent=0
    _
  %s11 = ssub.s32 1, %s9
  %s12 = scalar_select 0, %s11, %s9
  $region1: #{tpu_custom_call.1} parent=0
    #allocation2 [shape = 'u8[512]{0}', space=smem, size = 0x200, scoped, tag = 'input window, operand 0, single buffered']
    #allocation3 [shape = 's32[1]{0}', space=sflag, size = 0x4, scoped, tag = 'scoped memory for tpu_custom_call.1']
    #allocation4 [shape = 's32[1]{0}', space=sflag, size = 0x4, scoped, tag = 'scoped memory for tpu_custom_call.1']
    #allocation5 [shape = 'u8[12288]{0}', space=vmem, size = 0x3000, scoped, tag = 'output window, operand 0, single buffered']
    #allocation6 [shape = 'u8[4096]{0}', space=vmem, size = 0x1000, scoped, tag = 'output window, operand 1, single buffered']
    #allocation7 [shape = 's32[1]{0}', space=sflag, size = 0x4, scoped, tag = 'scoped memory for tpu_custom_call.1']
    %13 = vsyncpa [#allocation4], 0
    %14 = vsyncpa [#allocation3], 0
    %15 = vsyncpa [#allocation7], 0
    // Predicated region
    $region2: #{tpu_custom_call.1} parent=1 // pred_check
      _
    $region3: #{tpu_custom_call.1} parent=1 // pred_check_branch
      %17 = sbr.rel (0) target = $region5
    $region4: #{tpu_custom_call.1} parent=1 // pred_region
      %s19 = ssub.s32 16, 16
      %20 = vsyncadd [#allocation4], %s19
      %s22 = sshll.u32 %s0, 4
      %s23 = int_to_ptr.vmem [resolvable:$true] %s22
      %25 = dma.vmem_to_smem %s23, 16, [#allocation2], [#allocation4]
    $region5: #{tpu_custom_call.1} parent=1 // pred_fallthru
      _
    // Predicated region
    $region6: #{tpu_custom_call.1} parent=1 // pred_check
      _
    $region7: #{tpu_custom_call.1} parent=1 // pred_check_branch
      %27 = sbr.rel (0) target = $region9
    $region8: #{tpu_custom_call.1} parent=1 // pred_region
      _
    $region9: #{tpu_custom_call.1} parent=1 // pred_fallthru
      _
    // Predicated region
    $region10: #{tpu_custom_call.1} parent=1 // pred_check
      _
    $region11: #{tpu_custom_call.1} parent=1 // pred_check_branch
      %29 = sbr.rel (0) target = $region13
    $region12: #{tpu_custom_call.1} parent=1 // pred_region
      _
    $region13: #{tpu_custom_call.1} parent=1 // pred_fallthru
      _
    // Predicated region
    $region14: #{tpu_custom_call.1} parent=1 // pred_check
      _
    $region15: #{tpu_custom_call.1} parent=1 // pred_check_branch
      %31 = sbr.rel (0) target = $region17
    $region16: #{tpu_custom_call.1} parent=1 // pred_region
      _
    $region17: #{tpu_custom_call.1} parent=1 // pred_fallthru
      _
    // Predicated region
    $region18: #{tpu_custom_call.1} parent=1 // pred_check
      _
    $region19: #{tpu_custom_call.1} parent=1 // pred_check_branch
      %33 = sbr.rel (0) target = $region21
    $region20: #{tpu_custom_call.1} parent=1 // pred_region
      _
    $region21: #{tpu_custom_call.1} parent=1 // pred_fallthru
      _
    // Predicated region
    $region22: #{tpu_custom_call.1} parent=1 // pred_check
      _
    $region23: #{tpu_custom_call.1} parent=1 // pred_check_branch
      %35 = sbr.rel (0) target = $region25
    $region24: #{tpu_custom_call.1} parent=1 // pred_region
      _
    $region25: #{tpu_custom_call.1} parent=1 // pred_fallthru
      _
    // Predicated region
    $region26: #{tpu_custom_call.1} parent=1 // pred_check
      _
    $region27: #{tpu_custom_call.1} parent=1 // pred_check_branch
      %37 = sbr.rel (0) target = $region29
    $region28: #{tpu_custom_call.1} parent=1 // pred_region
      %38 = dma.done [#allocation4], 16
    $region29: #{tpu_custom_call.1} parent=1 // pred_fallthru
      _
    %39 = sfence
    %s40 = sld [smem:[#allocation2]]
    %s41 = sld [smem:[#allocation2 + $0x1]]
    %v42 = vld [vmem:[%s1] sm:$0xff]
    %v43 = vld [vmem:[%s1 + $0x8] sm:$0xff]
    %v44 = vld [vmem:[%s1 + $0x10] sm:$0xff]
    %v45 = vld [vmem:[%s2] sm:$0xff]
    %v46 = vld [vmem:[%s2 + $0x8] sm:$0xff]
    %v47 = vld [vmem:[%s2 + $0x10] sm:$0xff]
    %v48 = vld [vmem:[%s2 + $0x18] sm:$0xff]
    %v49 = vld [vmem:[%s3] sm:$0xff]
    %v50 = vld [vmem:[%s3 + $0x8] sm:$0xff]
    %v51 = vld [vmem:[%s3 + $0x10] sm:$0xff]
    %v52 = vld [vmem:[%s3 + $0x18] sm:$0xff]
    %54 = vset.pattern.permute.xlu0 0
    %55 = vperm.xlu0 %54, %v49
    %v56 = vpop.permute.xlu0 %55
    %59 = vset.pattern.permute.xlu0 0
    %60 = vperm.xlu0 %59, %v50
    %v61 = vpop.permute.xlu0 %60
    %64 = vset.pattern.permute.xlu0 0
    %65 = vperm.xlu0 %64, %v51
    %v66 = vpop.permute.xlu0 %65
    %69 = vset.pattern.permute.xlu0 0
    %70 = vperm.xlu0 %69, %v52
    %v71 = vpop.permute.xlu0 %70
    %vm73 = vcmask 64512
    %v75 = vsel %vm73, %v45, 0
    %v78 = vsel %vm73, %v46, 0
    %v81 = vsel %vm73, %v47, 0
    %v84 = vsel %vm73, %v48, 0
    %86 = vmatprep.subr.mxu0 %v43
    %87 = vmatpush1.msra.mxu0 %v42
    %88 = vmatprep.subr.mxu0 0.0
    %89 = vmatpush1.msra.mxu0 0.0
    %90 = vmatprep.subr.mxu0 0.0
    %91 = vmatpush1.msra.mxu0 0.0
    %92 = vmatprep.subr.mxu0 0.0
    %93 = vmatpush1.msra.mxu0 0.0
    %94 = vmatprep.subr.mxu0 0.0
    %95 = vmatpush1.msra.mxu0 0.0
    %96 = vmatprep.subr.mxu0 0.0
    %97 = vmatpush1.msra.mxu0 0.0
    %98 = vmatprep.subr.mxu0 0.0
    %99 = vmatpush1.msra.mxu0 0.0
    %100 = vmatprep.subr.mxu0 0.0
    %101 = vmatpush1.msra.mxu0 0.0
    %102 = vmatprep.subr.mxu0 0.0
    %103 = vmatpush1.msra.mxu0 0.0
    %104 = vmatprep.subr.mxu0 0.0
    %105 = vmatpush1.msra.mxu0 0.0
    %106 = vmatprep.subr.mxu0 0.0
    %107 = vmatpush1.msra.mxu0 0.0
    %108 = vmatprep.subr.mxu0 0.0
    %109 = vmatpush1.msra.mxu0 0.0
    %110 = vmatprep.subr.mxu0 0.0
    %111 = vmatpush1.msra.mxu0 0.0
    %112 = vmatprep.subr.mxu0 0.0
    %113 = vmatpush1.msra.mxu0 0.0
    %114 = vmatprep.subr.mxu0 0.0
    %115 = vmatpush1.msra.mxu0 0.0
    %116 = vmatprep.subr.mxu0 0.0
    %117 = vmatpush1.msra.mxu0 0.0
    %118 = vmatprep.subr.mxu0 0.0
    %119 = vmatpush1.msra.mxu0 0.0
    %120 = vmatprep.subr.mxu0 0.0
    %121 = vmatpush1.msra.mxu0 0.0
    %122 = vmatprep.subr.mxu0 0.0
    %123 = vmatpush1.msra.mxu0 0.0
    %124 = vmatprep.subr.mxu0 0.0
    %125 = vmatpush1.msra.mxu0 0.0
    %126 = vmatprep.subr.mxu0 0.0
    %127 = vmatpush1.msra.mxu0 0.0
    %128 = vmatprep.subr.mxu0 0.0
    %129 = vmatpush1.msra.mxu0 0.0
    %130 = vmatprep.subr.mxu0 0.0
    %131 = vmatpush1.msra.mxu0 0.0
    %132 = vmatprep.subr.mxu0 0.0
    %133 = vmatpush1.msra.mxu0 0.0
    %134 = vmatprep.subr.mxu0 0.0
    %135 = vmatpush1.msra.mxu0 0.0
    %136 = vmatprep.subr.mxu0 0.0
    %137 = vmatpush1.msra.mxu0 0.0
    %138 = vmatprep.subr.mxu0 0.0
    %139 = vmatpush1.msra.mxu0 0.0
    %140 = vmatprep.subr.mxu0 0.0
    %141 = vmatpush1.msra.mxu0 0.0
    %142 = vmatprep.subr.mxu0 0.0
    %143 = vmatpush1.msra.mxu0 0.0
    %144 = vmatprep.subr.mxu0 0.0
    %145 = vmatpush1.msra.mxu0 0.0
    %146 = vmatprep.subr.mxu0 0.0
    %147 = vmatpush1.msra.mxu0 0.0
    %148 = vmatprep.subr.mxu0 0.0
    %149 = vmatpush1.msra.mxu0 0.0
    %150 = vmatprep.mubr.f32.mxu0 0.0
    %151 = vmatmul.mubr.f32.gmra.mrb[0].mxu0 %v75
    %v152 = vpop.f32.mrb[0].mxu0
    %v153 = vadd.f32 %v56, %v152
    %v154 = vpop.f32.mrb[0].mxu0
    %v155 = vadd.f32 %v56, %v154
    %156 = vmatprep.mubr.f32.mxu0 0.0
    %157 = vmatmul.mubr.f32.gmra.mrb[0].mxu0 %v78
    %v158 = vpop.f32.mrb[0].mxu0
    %v159 = vadd.f32 %v61, %v158
    %v160 = vpop.f32.mrb[0].mxu0
    %v161 = vadd.f32 %v61, %v160
    %162 = vmatprep.mubr.f32.mxu0 0.0
    %163 = vmatmul.mubr.f32.gmra.mrb[0].mxu0 %v81
    %v164 = vpop.f32.mrb[0].mxu0
    %v165 = vadd.f32 %v66, %v164
    %v166 = vpop.f32.mrb[0].mxu0
    %v167 = vadd.f32 %v66, %v166
    %168 = vmatprep.mubr.f32.mxu0 0.0
    %169 = vmatmul.mubr.f32.gmra.mrb[0].mxu0 %v84
    %v170 = vpop.f32.mrb[0].mxu0
    %v171 = vadd.f32 %v71, %v170
    %v172 = vpop.f32.mrb[0].mxu0
    %v173 = vadd.f32 %v71, %v172
    %174 = vdwg.mxu0
    %175 = vmatprep.subr.mxu0 0.0
    %176 = vmatpush1.msra.mxu0 %v44
    %177 = vmatprep.subr.mxu0 0.0
    %178 = vmatpush1.msra.mxu0 0.0
    %179 = vmatprep.subr.mxu0 0.0
    %180 = vmatpush1.msra.mxu0 0.0
    %181 = vmatprep.subr.mxu0 0.0
    %182 = vmatpush1.msra.mxu0 0.0
    %183 = vmatprep.subr.mxu0 0.0
    %184 = vmatpush1.msra.mxu0 0.0
    %185 = vmatprep.subr.mxu0 0.0
    %186 = vmatpush1.msra.mxu0 0.0
    %187 = vmatprep.subr.mxu0 0.0
    %188 = vmatpush1.msra.mxu0 0.0
    %189 = vmatprep.subr.mxu0 0.0
    %190 = vmatpush1.msra.mxu0 0.0
    %191 = vmatprep.subr.mxu0 0.0
    %192 = vmatpush1.msra.mxu0 0.0
    %193 = vmatprep.subr.mxu0 0.0
    %194 = vmatpush1.msra.mxu0 0.0
    %195 = vmatprep.subr.mxu0 0.0
    %196 = vmatpush1.msra.mxu0 0.0
    %197 = vmatprep.subr.mxu0 0.0
    %198 = vmatpush1.msra.mxu0 0.0
    %199 = vmatprep.subr.mxu0 0.0
    %200 = vmatpush1.msra.mxu0 0.0
    %201 = vmatprep.subr.mxu0 0.0
    %202 = vmatpush1.msra.mxu0 0.0
    %203 = vmatprep.subr.mxu0 0.0
    %204 = vmatpush1.msra.mxu0 0.0
    %205 = vmatprep.subr.mxu0 0.0
    %206 = vmatpush1.msra.mxu0 0.0
    %207 = vmatprep.subr.mxu0 0.0
    %208 = vmatpush1.msra.mxu0 0.0
    %209 = vmatprep.subr.mxu0 0.0
    %210 = vmatpush1.msra.mxu0 0.0
    %211 = vmatprep.subr.mxu0 0.0
    %212 = vmatpush1.msra.mxu0 0.0
    %213 = vmatprep.subr.mxu0 0.0
    %214 = vmatpush1.msra.mxu0 0.0
    %215 = vmatprep.subr.mxu0 0.0
    %216 = vmatpush1.msra.mxu0 0.0
    %217 = vmatprep.subr.mxu0 0.0
    %218 = vmatpush1.msra.mxu0 0.0
    %219 = vmatprep.subr.mxu0 0.0
    %220 = vmatpush1.msra.mxu0 0.0
    %221 = vmatprep.subr.mxu0 0.0
    %222 = vmatpush1.msra.mxu0 0.0
    %223 = vmatprep.subr.mxu0 0.0
    %224 = vmatpush1.msra.mxu0 0.0
    %225 = vmatprep.subr.mxu0 0.0
    %226 = vmatpush1.msra.mxu0 0.0
    %227 = vmatprep.subr.mxu0 0.0
    %228 = vmatpush1.msra.mxu0 0.0
    %229 = vmatprep.subr.mxu0 0.0
    %230 = vmatpush1.msra.mxu0 0.0
    %231 = vmatprep.subr.mxu0 0.0
    %232 = vmatpush1.msra.mxu0 0.0
    %233 = vmatprep.subr.mxu0 0.0
    %234 = vmatpush1.msra.mxu0 0.0
    %235 = vmatprep.subr.mxu0 0.0
    %236 = vmatpush1.msra.mxu0 0.0
    %237 = vmatprep.subr.mxu0 0.0
    %238 = vmatpush1.msra.mxu0 0.0
    %239 = vmatprep.mubr.f32.mxu0 0.0
    %240 = vmatmul.mubr.f32.gmra.mrb[0].mxu0 %v75
    %v241 = vpop.f32.mrb[0].mxu0
    %v242 = vadd.f32 %v56, %v241
    %v243 = vpop.f32.mrb[0].mxu0
    %244 = vmatprep.mubr.f32.mxu0 0.0
    %245 = vmatmul.mubr.f32.gmra.mrb[0].mxu0 %v78
    %v246 = vpop.f32.mrb[0].mxu0
    %v247 = vadd.f32 %v61, %v246
    %v248 = vpop.f32.mrb[0].mxu0
    %249 = vmatprep.mubr.f32.mxu0 0.0
    %250 = vmatmul.mubr.f32.gmra.mrb[0].mxu0 %v81
    %v251 = vpop.f32.mrb[0].mxu0
    %v252 = vadd.f32 %v66, %v251
    %v253 = vpop.f32.mrb[0].mxu0
    %254 = vmatprep.mubr.f32.mxu0 0.0
    %255 = vmatmul.mubr.f32.gmra.mrb[0].mxu0 %v84
    %v256 = vpop.f32.mrb[0].mxu0
    %v257 = vadd.f32 %v71, %v256
    %v258 = vpop.f32.mrb[0].mxu0
    %259 = vdwg.mxu0
    %v260 = vmax.f32 %v153, 0.0
    %v261 = vmax.f32 %v155, 0.0
    %v262 = vmax.f32 %v242, 0.0
    %v263 = vmax.f32 %v159, 0.0
    %v264 = vmax.f32 %v161, 0.0
    %v265 = vmax.f32 %v247, 0.0
    %v266 = vmax.f32 %v165, 0.0
    %v267 = vmax.f32 %v167, 0.0
    %v268 = vmax.f32 %v252, 0.0
    %v269 = vmax.f32 %v171, 0.0
    %v270 = vmax.f32 %v173, 0.0
    %v271 = vmax.f32 %v257, 0.0
    %v272 = vld [vmem:[%s4] sm:$0xff]
    %v273 = vld [vmem:[%s5] sm:$0xff]
    %275 = vset.pattern.permute.xlu0 0
    %276 = vperm.xlu0 %275, %v273
    %v277 = vpop.permute.xlu0 %276
    %vm279 = vcmask 261120
    %v281 = vsel %vm279, %v272, 0
    %283 = vmatprep.subr.mxu0 %v261
    %284 = vmatpush1.msra.mxu0 %v260
    %285 = vmatprep.subr.mxu0 %v264
    %286 = vmatpush1.msra.mxu0 %v263
    %287 = vmatprep.subr.mxu0 %v267
    %288 = vmatpush1.msra.mxu0 %v266
    %289 = vmatprep.subr.mxu0 %v270
    %290 = vmatpush1.msra.mxu0 %v269
    %291 = vmatprep.subr.mxu0 0.0
    %292 = vmatpush1.msra.mxu0 0.0
    %293 = vmatprep.subr.mxu0 0.0
    %294 = vmatpush1.msra.mxu0 0.0
    %295 = vmatprep.subr.mxu0 0.0
    %296 = vmatpush1.msra.mxu0 0.0
    %297 = vmatprep.subr.mxu0 0.0
    %298 = vmatpush1.msra.mxu0 0.0
    %299 = vmatprep.subr.mxu0 0.0
    %300 = vmatpush1.msra.mxu0 0.0
    %301 = vmatprep.subr.mxu0 0.0
    %302 = vmatpush1.msra.mxu0 0.0
    %303 = vmatprep.subr.mxu0 0.0
    %304 = vmatpush1.msra.mxu0 0.0
    %305 = vmatprep.subr.mxu0 0.0
    %306 = vmatpush1.msra.mxu0 0.0
    %307 = vmatprep.subr.mxu0 0.0
    %308 = vmatpush1.msra.mxu0 0.0
    %309 = vmatprep.subr.mxu0 0.0
    %310 = vmatpush1.msra.mxu0 0.0
    %311 = vmatprep.subr.mxu0 0.0
    %312 = vmatpush1.msra.mxu0 0.0
    %313 = vmatprep.subr.mxu0 0.0
    %314 = vmatpush1.msra.mxu0 0.0
    %315 = vmatprep.subr.mxu0 0.0
    %316 = vmatpush1.msra.mxu0 0.0
    %317 = vmatprep.subr.mxu0 0.0
    %318 = vmatpush1.msra.mxu0 0.0
    %319 = vmatprep.subr.mxu0 0.0
    %320 = vmatpush1.msra.mxu0 0.0
    %321 = vmatprep.subr.mxu0 0.0
    %322 = vmatpush1.msra.mxu0 0.0
    %323 = vmatprep.subr.mxu0 0.0
    %324 = vmatpush1.msra.mxu0 0.0
    %325 = vmatprep.subr.mxu0 0.0
    %326 = vmatpush1.msra.mxu0 0.0
    %327 = vmatprep.subr.mxu0 0.0
    %328 = vmatpush1.msra.mxu0 0.0
    %329 = vmatprep.subr.mxu0 0.0
    %330 = vmatpush1.msra.mxu0 0.0
    %331 = vmatprep.subr.mxu0 0.0
    %332 = vmatpush1.msra.mxu0 0.0
    %333 = vmatprep.subr.mxu0 0.0
    %334 = vmatpush1.msra.mxu0 0.0
    %335 = vmatprep.subr.mxu0 0.0
    %336 = vmatpush1.msra.mxu0 0.0
    %337 = vmatprep.subr.mxu0 0.0
    %338 = vmatpush1.msra.mxu0 0.0
    %339 = vmatprep.subr.mxu0 0.0
    %340 = vmatpush1.msra.mxu0 0.0
    %341 = vmatprep.subr.mxu0 0.0
    %342 = vmatpush1.msra.mxu0 0.0
    %343 = vmatprep.subr.mxu0 0.0
    %344 = vmatpush1.msra.mxu0 0.0
    %345 = vmatprep.subr.mxu0 0.0
    %346 = vmatpush1.msra.mxu0 0.0
    %347 = vmatprep.mubr.f32.mxu0 0.0
    %348 = vmatmul.mubr.f32.gmra.mrb[0].mxu0 %v281
    %v349 = vpop.f32.mrb[0].mxu0
    %v350 = vadd.f32 %v277, %v349
    %v351 = vpop.f32.mrb[0].mxu0
    %v352 = vadd.f32 %v277, %v351
    %353 = vdwg.mxu0
    %354 = vmatprep.subr.mxu0 0.0
    %355 = vmatpush1.msra.mxu0 %v262
    %356 = vmatprep.subr.mxu0 0.0
    %357 = vmatpush1.msra.mxu0 %v265
    %358 = vmatprep.subr.mxu0 0.0
    %359 = vmatpush1.msra.mxu0 %v268
    %360 = vmatprep.subr.mxu0 0.0
    %361 = vmatpush1.msra.mxu0 %v271
    %362 = vmatprep.subr.mxu0 0.0
    %363 = vmatpush1.msra.mxu0 0.0
    %364 = vmatprep.subr.mxu0 0.0
    %365 = vmatpush1.msra.mxu0 0.0
    %366 = vmatprep.subr.mxu0 0.0
    %367 = vmatpush1.msra.mxu0 0.0
    %368 = vmatprep.subr.mxu0 0.0
    %369 = vmatpush1.msra.mxu0 0.0
    %370 = vmatprep.subr.mxu0 0.0
    %371 = vmatpush1.msra.mxu0 0.0
    %372 = vmatprep.subr.mxu0 0.0
    %373 = vmatpush1.msra.mxu0 0.0
    %374 = vmatprep.subr.mxu0 0.0
    %375 = vmatpush1.msra.mxu0 0.0
    %376 = vmatprep.subr.mxu0 0.0
    %377 = vmatpush1.msra.mxu0 0.0
    %378 = vmatprep.subr.mxu0 0.0
    %379 = vmatpush1.msra.mxu0 0.0
    %380 = vmatprep.subr.mxu0 0.0
    %381 = vmatpush1.msra.mxu0 0.0
    %382 = vmatprep.subr.mxu0 0.0
    %383 = vmatpush1.msra.mxu0 0.0
    %384 = vmatprep.subr.mxu0 0.0
    %385 = vmatpush1.msra.mxu0 0.0
    %386 = vmatprep.subr.mxu0 0.0
    %387 = vmatpush1.msra.mxu0 0.0
    %388 = vmatprep.subr.mxu0 0.0
    %389 = vmatpush1.msra.mxu0 0.0
    %390 = vmatprep.subr.mxu0 0.0
    %391 = vmatpush1.msra.mxu0 0.0
    %392 = vmatprep.subr.mxu0 0.0
    %393 = vmatpush1.msra.mxu0 0.0
    %394 = vmatprep.subr.mxu0 0.0
    %395 = vmatpush1.msra.mxu0 0.0
    %396 = vmatprep.subr.mxu0 0.0
    %397 = vmatpush1.msra.mxu0 0.0
    %398 = vmatprep.subr.mxu0 0.0
    %399 = vmatpush1.msra.mxu0 0.0
    %400 = vmatprep.subr.mxu0 0.0
    %401 = vmatpush1.msra.mxu0 0.0
    %402 = vmatprep.subr.mxu0 0.0
    %403 = vmatpush1.msra.mxu0 0.0
    %404 = vmatprep.subr.mxu0 0.0
    %405 = vmatpush1.msra.mxu0 0.0
    %406 = vmatprep.subr.mxu0 0.0
    %407 = vmatpush1.msra.mxu0 0.0
    %408 = vmatprep.subr.mxu0 0.0
    %409 = vmatpush1.msra.mxu0 0.0
    %410 = vmatprep.subr.mxu0 0.0
    %411 = vmatpush1.msra.mxu0 0.0
    %412 = vmatprep.subr.mxu0 0.0
    %413 = vmatpush1.msra.mxu0 0.0
    %414 = vmatprep.subr.mxu0 0.0
    %415 = vmatpush1.msra.mxu0 0.0
    %416 = vmatprep.subr.mxu0 0.0
    %417 = vmatpush1.msra.mxu0 0.0
    %418 = vmatprep.mubr.f32.mxu0 0.0
    %419 = vmatmul.mubr.f32.gmra.mrb[0].mxu0 %v281
    %v420 = vpop.f32.mrb[0].mxu0
    %v421 = vadd.f32 %v277, %v420
    %v422 = vpop.f32.mrb[0].mxu0
    %423 = vdwg.mxu0
    %v424 = vsub.f32 0.0, %v350
    %v425 = vsub.f32 0.0, %v352
    %v426 = vsub.f32 0.0, %v421
    %v427 = vmul.f32 %v424, 1.442695
    %v428 = vpow.pop %v427
    %v429 = vmul.f32 %v425, 1.442695
    %v430 = vpow.pop %v429
    %v431 = vmul.f32 %v426, 1.442695
    %v432 = vpow.pop %v431
    %v433 = vadd.f32 %v428, 1.0
    %v434 = vadd.f32 %v430, 1.0
    %v435 = vadd.f32 %v432, 1.0
    %v436 = vrcp.pop %v433
    %v437 = vrcp.pop %v434
    %v438 = vrcp.pop %v435
    %v439 = vlaneseq
    %v440 = vshrl.u32 %v439, 7
    %v441 = vsub.s32 5, %v440
    %v442 = vrot.slane %v42, %v441
    %v443 = vlaneseq
    %v444 = vshrl.u32 %v443, 7
    %v445 = vsub.s32 5, %v444
    %v446 = vrot.slane %v43, %v445
    %v447 = vlaneseq
    %v448 = vshrl.u32 %v447, 7
    %v449 = vsub.s32 5, %v448
    %v450 = vrot.slane %v44, %v449
    %v451 = vmul.f32 %v436, %v442
    %v452 = vmul.f32 %v437, %v446
    %v453 = vmul.f32 %v438, %v450
    %454 = vst [vmem:[#allocation5] sm:$0xff] %v451
    %455 = vst [vmem:[#allocation5 + $0x8] sm:$0xff] %v452
    %456 = vst [vmem:[#allocation5 + $0x10] sm:$0xff] %v453
    %v457 = vlaneseq
    %v458 = vshrl.u32 %v457, 7
    %v459 = vsub.s32 4, %v458
    %v460 = vrot.slane %v42, %v459
    %v461 = vlaneseq
    %v462 = vshrl.u32 %v461, 7
    %v463 = vsub.s32 4, %v462
    %v464 = vrot.slane %v43, %v463
    %v465 = vlaneseq
    %v466 = vshrl.u32 %v465, 7
    %v467 = vsub.s32 4, %v466
    %v468 = vrot.slane %v44, %v467
    %v469 = vmul.f32 %v460, %v451
    %v470 = vmul.f32 %v464, %v452
    %v471 = vmul.f32 %v468, %v453
    %v472 = vadd.f32 %v469, 1e-12
    %v473 = vadd.f32 %v470, 1e-12
    %v474 = vadd.f32 %v471, 1e-12
    %v475 = vstv %s40
    %v476 = vrcp.pop %v472
    %v477 = vmul.f32 %v475, %v476
    %v478 = vrcp.pop %v473
    %v479 = vmul.f32 %v475, %v478
    %v480 = vrcp.pop %v474
    %v481 = vmul.f32 %v475, %v480
    %v482 = vsub.f32 0.0, %v477
    %v483 = vsub.f32 0.0, %v479
    %v484 = vsub.f32 0.0, %v481
    %v485 = vmul.f32 %v482, 1.442695
    %v486 = vpow.pop %v485
    %v487 = vmul.f32 %v483, 1.442695
    %v488 = vpow.pop %v487
    %v489 = vmul.f32 %v484, 1.442695
    %v490 = vpow.pop %v489
    %v491 = vmul.f32 %v477, 0.5
    %v492 = vmul.f32 %v479, 0.5
    %v493 = vmul.f32 %v481, 0.5
    %v494 = vmul.f32 %v477, 0.33333334
    %v495 = vmul.f32 %v479, 0.33333334
    %v496 = vmul.f32 %v481, 0.33333334
    %v497 = vsub.f32 1.0, %v494
    %v498 = vsub.f32 1.0, %v495
    %v499 = vsub.f32 1.0, %v496
    %v500 = vmul.f32 %v491, %v497
    %v501 = vmul.f32 %v492, %v498
    %v502 = vmul.f32 %v493, %v499
    %v503 = vsub.f32 1.0, %v500
    %v504 = vsub.f32 1.0, %v501
    %v505 = vsub.f32 1.0, %v502
    %v506 = vmul.f32 %v477, %v503
    %v507 = vmul.f32 %v479, %v504
    %v508 = vmul.f32 %v481, %v505
    %vm509 = vcmp.lt.f32.partialorder %v477, 0.001
    %vm510 = vcmp.lt.f32.partialorder %v479, 0.001
    %vm511 = vcmp.lt.f32.partialorder %v481, 0.001
    %v512 = vsub.f32 1.0, %v486
    %v513 = vsub.f32 1.0, %v488
    %v514 = vsub.f32 1.0, %v490
    %v515 = vsel %vm509, %v506, %v512
    %v516 = vsel %vm510, %v507, %v513
    %v517 = vsel %vm511, %v508, %v514
    %v518 = vmax.f32 %v515, 1e-12
    %v519 = vmax.f32 %v516, 1e-12
    %v520 = vmax.f32 %v517, 1e-12
    %v521 = vmin.f32 %v477, 27.631
    %v522 = vmin.f32 %v479, 27.631
    %v523 = vmin.f32 %v481, 27.631
    %v524 = vmul.f32 %v521, 1.442695
    %v525 = vpow.pop %v524
    %v526 = vmul.f32 %v522, 1.442695
    %v527 = vpow.pop %v526
    %v528 = vmul.f32 %v523, 1.442695
    %v529 = vpow.pop %v528
    %v530 = vstv %s41
    %v531 = vmul.f32 %v530, %v525
    %v532 = vmul.f32 %v530, %v527
    %v533 = vmul.f32 %v530, %v529
    %v534 = vlaneseq
    %v535 = vand.u32 %v534, 127
    %v536 = vadd.s32 %v535, 128
    %v537 = vadd.s32 %v535, 256
    %s538 = smul.u32 0, 384
    %v539 = vstv %s538
    %v540 = vadd.s32 %v539, %v535
    %v541 = vadd.s32 %v539, %v536
    %v542 = vadd.s32 %v539, %v537
    %vm543 = vcmp.lt.s32.totalorder %v540, 300
    %vm544 = vcmp.lt.s32.totalorder %v541, 300
    %vm545 = vcmp.lt.s32.totalorder %v542, 300
    %v546 = vsel %vm543, 1, 0
    %v547 = vsel %vm544, 1, 0
    %v548 = vsel %vm545, 1, 0
    %v549 = vcvt.s32.f32 %v546
    %v550 = vcvt.s32.f32 %v547
    %v551 = vcvt.s32.f32 %v548
    %vm552 = vcmask 1043456
    %v553 = vsel %vm552, %v531, 0.0
    %v554 = vrot.slane %v553, 4
    %v555 = vadd.f32 %v553, %v554
    %v556 = vrot.slane %v555, 2
    %v557 = vadd.f32 %v555, %v556
    %v558 = vrot.slane %v557, 1
    %v559 = vadd.f32 %v557, %v558
    %v560 = vsel %vm552, %v532, 0.0
    %v561 = vrot.slane %v560, 4
    %v562 = vadd.f32 %v560, %v561
    %v563 = vrot.slane %v562, 2
    %v564 = vadd.f32 %v562, %v563
    %v565 = vrot.slane %v564, 1
    %v566 = vadd.f32 %v564, %v565
    %v567 = vsel %vm552, %v533, 0.0
    %v568 = vrot.slane %v567, 4
    %v569 = vadd.f32 %v567, %v568
    %v570 = vrot.slane %v569, 2
    %v571 = vadd.f32 %v569, %v570
    %v572 = vrot.slane %v571, 1
    %v573 = vadd.f32 %v571, %v572
    %v574 = vmul.f32 %v559, %v549
    %v575 = vmul.f32 %v566, %v550
    %v576 = vmul.f32 %v573, %v551
    %v577 = vmul.f32 %v451, %v486
    %v578 = vmul.f32 %v452, %v488
    %v579 = vmul.f32 %v453, %v490
    %v580 = vsel %vm552, %v577, 0.0
    %v581 = vrot.slane %v580, 4
    %v582 = vadd.f32 %v580, %v581
    %v583 = vrot.slane %v582, 2
    %v584 = vadd.f32 %v582, %v583
    %v585 = vrot.slane %v584, 1
    %v586 = vadd.f32 %v584, %v585
    %v587 = vsel %vm552, %v578, 0.0
    %v588 = vrot.slane %v587, 4
    %v589 = vadd.f32 %v587, %v588
    %v590 = vrot.slane %v589, 2
    %v591 = vadd.f32 %v589, %v590
    %v592 = vrot.slane %v591, 1
    %v593 = vadd.f32 %v591, %v592
    %v594 = vsel %vm552, %v579, 0.0
    %v595 = vrot.slane %v594, 4
    %v596 = vadd.f32 %v594, %v595
    %v597 = vrot.slane %v596, 2
    %v598 = vadd.f32 %v596, %v597
    %v599 = vrot.slane %v598, 1
    %v600 = vadd.f32 %v598, %v599
    %v601 = vsub.f32 %v586, %v42
    %v602 = vsub.f32 %v593, %v43
    %v603 = vsub.f32 %v600, %v44
    %v604 = vmul.f32 %v601, %v549
    %v605 = vmul.f32 %v602, %v550
    %v606 = vmul.f32 %v603, %v551
    %v607 = vlog2.pop %v518
    %v608 = vmul.f32 %v607, 0.6931472
    %v609 = vlog2.pop %v519
    %v610 = vmul.f32 %v609, 0.6931472
    %v611 = vlog2.pop %v520
    %v612 = vmul.f32 %v611, 0.6931472
    %v613 = vmul.f32 %v608, 0.4342945
    %v614 = vmul.f32 %v610, 0.4342945
    %v615 = vmul.f32 %v612, 0.4342945
    %v616 = vmul.f32 %v613, %v549
    %v617 = vmul.f32 %v614, %v550
    %v618 = vmul.f32 %v615, %v551
    %vm619 = vcmask 1040384
    %v620 = vsel %vm619, %v574, 0.0
    %v621 = vsel %vm619, %v575, 0.0
    %v622 = vadd.f32 %v620, %v621
    %v623 = vsel %vm619, %v576, 0.0
    %v624 = vadd.f32 %v622, %v623
    %625 = vadd.xlane.f32.xlu0 %v624
    %v626 = vpop.xlane.xlu0 %625
    %v627 = vrot.slane %v626, 4
    %v628 = vadd.f32 %v626, %v627
    %v629 = vrot.slane %v628, 2
    %v630 = vadd.f32 %v628, %v629
    %v631 = vrot.slane %v630, 1
    %v632 = vadd.f32 %v630, %v631
    %s633 = vtos %v632
    %v637 = vrot.slane %v604, 5
    %v638 = vrot.slane %v605, 5
    %v639 = vrot.slane %v606, 5
    %v643 = vsel %vm619, %v637, 0.0
    %v644 = vsel %vm619, %v638, 0.0
    %v645 = vadd.f32 %v643, %v644
    %v646 = vsel %vm619, %v639, 0.0
    %v647 = vadd.f32 %v645, %v646
    %648 = vadd.xlane.f32.xlu0 %v647
    %v649 = vpop.xlane.xlu0 %648
    %v650 = vrot.slane %v649, 4
    %v651 = vadd.f32 %v649, %v650
    %v652 = vrot.slane %v651, 2
    %v653 = vadd.f32 %v651, %v652
    %v654 = vrot.slane %v653, 1
    %v655 = vadd.f32 %v653, %v654
    %s656 = vtos %v655
    %v660 = vrot.slane %v616, 3
    %v661 = vrot.slane %v617, 3
    %v662 = vrot.slane %v618, 3
    %v666 = vsel %vm619, %v660, 0.0
    %v667 = vsel %vm619, %v661, 0.0
    %v668 = vadd.f32 %v666, %v667
    %v669 = vsel %vm619, %v662, 0.0
    %v670 = vadd.f32 %v668, %v669
    %671 = vadd.xlane.f32.xlu0 %v670
    %v672 = vpop.xlane.xlu0 %671
    %v673 = vrot.slane %v672, 4
    %v674 = vadd.f32 %v672, %v673
    %v675 = vrot.slane %v674, 2
    %v676 = vadd.f32 %v674, %v675
    %v677 = vrot.slane %v676, 1
    %v678 = vadd.f32 %v676, %v677
    %s679 = vtos %v678
    %v680 = vlaneseq
    %v681 = vshrl.u32 %v680, 7
    %vm682 = vcmp.eq.s32.totalorder %v681, 0
    %vm683 = vcmp.eq.s32.totalorder %v535, 0
    %vm684 = vmand %vm682, %vm683
    %vm685 = vcmp.eq.s32.totalorder %v535, 1
    %vm686 = vmand %vm682, %vm685
    %vm687 = vcmp.eq.s32.totalorder %v535, 2
    %vm688 = vmand %vm682, %vm687
    %v689 = vstv %s679
    %v690 = vsel %vm688, %v689, 0.0
    %v691 = vstv %s656
    %v692 = vsel %vm686, %v691, %v690
    %v693 = vstv %s633
    %v694 = vsel %vm684, %v693, %v692
    %695 = vst [vmem:[#allocation6] sm:$0xff] %v694
    // Predicated region
    $region30: #{tpu_custom_call.1} parent=1 // pred_check
      _
    $region31: #{tpu_custom_call.1} parent=1 // pred_check_branch
      %697 = sbr.rel (0) target = $region33
    $region32: #{tpu_custom_call.1} parent=1 // pred_region
      %s699 = ssub.s32 384, 384
      %700 = vsyncadd [#allocation3], %s699
      %s702 = sshll.u32 [#allocation5], 4
      %s703 = int_to_ptr.vmem [resolvable:$true] %s702
      %705 = dma.vmem_to_hbm [thread:$0]  %s703, 384, %s6, [#allocation3]
    $region33: #{tpu_custom_call.1} parent=1 // pred_fallthru
      _
    // Predicated region
    $region34: #{tpu_custom_call.1} parent=1 // pred_check
      _
    $region35: #{tpu_custom_call.1} parent=1 // pred_check_branch
      %707 = sbr.rel (0) target = $region37
    $region36: #{tpu_custom_call.1} parent=1 // pred_region
      %s709 = ssub.s32 128, 128
      %710 = vsyncadd [#allocation7], %s709
      %s712 = sshll.u32 [#allocation6], 4
      %s713 = int_to_ptr.vmem [resolvable:$true] %s712
      %715 = dma.vmem_to_hbm [thread:$0]  %s713, 128, %s7, [#allocation7]
    $region37: #{tpu_custom_call.1} parent=1 // pred_fallthru
      _
    // Predicated region
    $region38: #{tpu_custom_call.1} parent=1 // pred_check
      _
    $region39: #{tpu_custom_call.1} parent=1 // pred_check_branch
      %717 = sbr.rel (0) target = $region41
    $region40: #{tpu_custom_call.1} parent=1 // pred_region
      %718 = dma.done [#allocation3], 384
    $region41: #{tpu_custom_call.1} parent=1 // pred_fallthru
      _
    // Predicated region
    $region42: #{tpu_custom_call.1} parent=1 // pred_check
      _
    $region43: #{tpu_custom_call.1} parent=1 // pred_check_branch
      %720 = sbr.rel (0) target = $region45
    $region44: #{tpu_custom_call.1} parent=1 // pred_region
      %721 = dma.done [#allocation7], 128
    $region45: #{tpu_custom_call.1} parent=1 // pred_fallthru
      _
    %722 = vsyncpa [#allocation3], 1
    %723 = vsyncpa [#allocation7], 1
    %724 = vsyncpa [#allocation4], 1

</llo_original>
